<compile_context>
chip_gen: v6e
topology: v6e:2x2x1
jax: 0.10.0
libtpu: 0.0.40
codegen_flags: <defaults>
</compile_context>

<pallas_src>
import jax
import jax.numpy as jnp
from jax.experimental import pallas as pl
from jax.experimental.pallas import tpu as pltpu


def _round_up(x, m):
    return ((x + m - 1) // m) * m


def prior_kernel(x_ref, w_ref, wml_ref, bml_ref, wo_ref, bo_ref, eps_ref,
                 out_ref, mean_ref, logv_ref, z_ref, acc_ref):
    t = pl.program_id(1)

    @pl.when(t == 0)
    def _():
        acc_ref[...] = jnp.zeros_like(acc_ref)

    # Masked (pre-scaled) partial sum over this time tile: h_f contribution.
    x = x_ref[...].astype(jnp.float32)            # [tT, tB, Cp]
    w = w_ref[...].astype(jnp.float32)            # [tT, tB, 1]
    acc_ref[...] += jnp.sum(x * w, axis=0)        # [tB, Cp]

    @pl.when(t == pl.num_programs(1) - 1)
    def _():
        h_f = acc_ref[...]                                               # [tB, Cp]
        # Fused mean/logv head: one lane-dense [Cp, 2*Lp] matmul, then split.
        ml = jnp.dot(h_f, wml_ref[...].astype(jnp.float32),
                     preferred_element_type=jnp.float32) + bml_ref[...]  # [tB, 2Lp]
        half = ml.shape[-1] // 2
        mean = ml[:, :half]
        logv = ml[:, half:]
        # Reparameterized sample (eps supplied deterministically from outside).
        z = mean + eps_ref[...] * jnp.exp(0.5 * logv)                    # [tB, Lp]
        out = jnp.dot(z, wo_ref[...].astype(jnp.float32),
                      preferred_element_type=jnp.float32) + bo_ref[...]  # [tB, Cp]
        mean_ref[...] = mean
        logv_ref[...] = logv
        z_ref[...] = z
        out_ref[...] = out


def init_prior_params(key, embed_dim, latent_dim):
    """Deterministic nn.Linear-style init: U(-1/sqrt(fan_in), 1/sqrt(fan_in))."""
    ks = jax.random.split(key, 6)

    def lin(kw, kb, fan_in, fan_out):
        bound = 1.0 / jnp.sqrt(float(fan_in))
        w = jax.random.uniform(kw, (fan_in, fan_out), jnp.float32, -bound, bound)
        b = jax.random.uniform(kb, (1, fan_out), jnp.float32, -bound, bound)
        return w, b

    w_mean, b_mean = lin(ks[0], ks[1], embed_dim, latent_dim)
    w_logv, b_logv = lin(ks[2], ks[3], embed_dim, latent_dim)
    w_out, b_out = lin(ks[4], ks[5], latent_dim, embed_dim)
    return dict(w_mean=w_mean, b_mean=b_mean,
                w_logv=w_logv, b_logv=b_logv,
                w_out=w_out, b_out=b_out)


def prior_forward(inputs_tbc, mask, params, eps):
    """inputs_tbc: [T, B, C] (seq-first), mask: [B, T] or None, eps: [B, L]."""
    T, B, C = inputs_tbc.shape
    L = params["w_mean"].shape[1]

    # ---- pad to TPU-friendly sizes (lane = 128, sublane = 8) ---------------
    Cp = _round_up(C, 128)
    Lp = _round_up(L, 128)
    Bp = _round_up(B, 8)
    tB = min(Bp, 8)

    itemsize = jnp.dtype(inputs_tbc.dtype).itemsize
    # x block budget ~4 MiB per buffer (double-buffered -> ~8 MiB).
    tT = (4 * 1024 * 1024) // max(1, tB * Cp * itemsize)
    tT = max(8, (tT // 8) * 8)
    tT = min(tT, _round_up(T, 8))
    Tp = _round_up(T, tT)

    nB = Bp // tB
    nT = Tp // tT

    # ---- fold the masked-mean normalization into a pre-scaled weight ------
    # h_f[b] = sum_t x[t, b, :] * w_scaled[t, b]
    if mask is None:
        w_scaled = jnp.full((T, B), 1.0 / T, jnp.float32)
    else:
        m = mask.astype(jnp.float32)                                  # [B, T]
        msum = jnp.maximum(jnp.sum(m, axis=-1, keepdims=True), 1.0)   # /0 guard
        w_scaled = (m / msum).T                                       # [T, B]
    w_scaled = w_scaled[:, :, None]                                   # [T, B, 1]

    # ---- fuse + pad weights ------------------------------------------------
    def pad2(a, r, c):
        return jnp.pad(a.astype(jnp.float32),
                       ((0, r - a.shape[0]), (0, c - a.shape[1])))

    w_ml = jnp.concatenate([pad2(params["w_mean"], Cp, Lp),
                            pad2(params["w_logv"], Cp, Lp)], axis=1)  # [Cp, 2Lp]
    b_ml = jnp.concatenate([pad2(params["b_mean"], 1, Lp),
                            pad2(params["b_logv"], 1, Lp)], axis=1)   # [1, 2Lp]
    w_o = pad2(params["w_out"], Lp, Cp)                               # [Lp, Cp]
    b_o = pad2(params["b_out"], 1, Cp)                                # [1, Cp]

    x_p = inputs_tbc
    if (Tp, Bp, Cp) != (T, B, C):
        x_p = jnp.pad(inputs_tbc, ((0, Tp - T), (0, Bp - B), (0, Cp - C)))
    w_p = jnp.pad(w_scaled, ((0, Tp - T), (0, Bp - B), (0, 0)))
    eps_p = jnp.pad(eps.astype(jnp.float32), ((0, Bp - B), (0, Lp - L)))

    grid_spec = pltpu.PrefetchScalarGridSpec(
        num_scalar_prefetch=0,
        grid=(nB, nT),
        in_specs=[
            pl.BlockSpec((tT, tB, Cp), lambda b, t: (t, b, 0)),   # x  [T,B,C]
            pl.BlockSpec((tT, tB, 1), lambda b, t: (t, b, 0)),    # scaled mask
            pl.BlockSpec((Cp, 2 * Lp), lambda b, t: (0, 0)),      # w_mean|w_logv
            pl.BlockSpec((1, 2 * Lp), lambda b, t: (0, 0)),       # b_mean|b_logv
            pl.BlockSpec((Lp, Cp), lambda b, t: (0, 0)),          # w_out
            pl.BlockSpec((1, Cp), lambda b, t: (0, 0)),           # b_out
            pl.BlockSpec((tB, Lp), lambda b, t: (b, 0)),          # eps
        ],
        out_specs=[
            pl.BlockSpec((tB, Cp), lambda b, t: (b, 0)),          # output
            pl.BlockSpec((tB, Lp), lambda b, t: (b, 0)),          # mean
            pl.BlockSpec((tB, Lp), lambda b, t: (b, 0)),          # logv
            pl.BlockSpec((tB, Lp), lambda b, t: (b, 0)),          # z
        ],
        scratch_shapes=[pltpu.VMEM((tB, Cp), jnp.float32)],
    )

    out_shapes = (
        jax.ShapeDtypeStruct((Bp, Cp), jnp.float32),   # output
        jax.ShapeDtypeStruct((Bp, Lp), jnp.float32),   # mean
        jax.ShapeDtypeStruct((Bp, Lp), jnp.float32),   # logv
        jax.ShapeDtypeStruct((Bp, Lp), jnp.float32),   # z
    )

    out_p, mean_p, logv_p, z_p = pl.pallas_call(
        prior_kernel,
        out_shape=out_shapes,
        grid_spec=grid_spec,
        compiler_params=pltpu.CompilerParams(
            dimension_semantics=("parallel", "arbitrary")),
    )(x_p, w_p, w_ml, b_ml, w_o, b_o, eps_p)

    return (out_p[:B, :C], mean_p[:B, :L], logv_p[:B, :L], z_p[:B, :L])


def prior_forward_ref(inputs_tbc, mask, params, eps):
    """Pure-JAX reference for correctness checking (faithful to the module)."""
    x = jnp.transpose(inputs_tbc, (1, 0, 2)).astype(jnp.float32)
    if mask is None:
        h_f = jnp.mean(x, axis=1)
    else:
        m = mask.astype(jnp.float32)
        h_f = jnp.sum(x * m[:, :, None], axis=1) / jnp.sum(m, axis=-1, keepdims=True)
    mean = h_f @ params["w_mean"] + params["b_mean"]
    logv = h_f @ params["w_logv"] + params["b_logv"]
    z = mean + eps * jnp.exp(0.5 * logv)
    out = z @ params["w_out"] + params["b_out"]
    return out, mean, logv, z


if __name__ == "__main__":
    # Small shapes: seq T=8, batch B=2, encoder_embed_dim C=32, latent_dim L=32
    T, B, C, L = 8, 2, 32, 32

    key = jax.random.PRNGKey(0)
    k_x, k_p, k_e = jax.random.split(key, 3)

    inputs = jax.random.normal(k_x, (T, B, C), jnp.float32)          # [T, B, C]
    mask = jnp.array([[1, 1, 1, 1, 1, 0, 0, 0],
                      [1, 1, 1, 1, 1, 1, 1, 1]], jnp.float32)        # [B, T]
    params = init_prior_params(k_p, C, L)
    eps = jax.random.normal(k_e, (B, L), jnp.float32)                # reparam noise

    out, mean, logv, z = prior_forward(inputs, mask, params, eps)
    jax.block_until_ready((out, mean, logv, z))

    ref = prior_forward_ref(inputs, mask, params, eps)
    for a, b in zip((out, mean, logv, z), ref):
        assert a.shape == b.shape
        assert jnp.max(jnp.abs(a - b)) < 2e-4

    # Also exercise the mask=None path once.
    out2, mean2, logv2, z2 = prior_forward(inputs, None, params, eps)
    jax.block_until_ready((out2, mean2, logv2, z2))
    ref2 = prior_forward_ref(inputs, None, params, eps)
    for a, b in zip((out2, mean2, logv2, z2), ref2):
        assert jnp.max(jnp.abs(a - b)) < 2e-4

    print("KERNEL_OK")
</pallas_src>

<mosaic_0001>
module attributes {stable_mosaic.version = 11 : i64} {
  func.func @prior_kernel(%arg0: i32, %arg1: i32, %arg2: memref<8x8x128xf32, #tpu.memory_space<vmem>>, %arg3: memref<8x8x1xf32, #tpu.memory_space<vmem>>, %arg4: memref<128x256xf32, #tpu.memory_space<vmem>>, %arg5: memref<1x256xf32, #tpu.memory_space<vmem>>, %arg6: memref<128x128xf32, #tpu.memory_space<vmem>>, %arg7: memref<1x128xf32, #tpu.memory_space<vmem>>, %arg8: memref<8x128xf32, #tpu.memory_space<vmem>>, %arg9: memref<8x128xf32, #tpu.memory_space<vmem>>, %arg10: memref<8x128xf32, #tpu.memory_space<vmem>>, %arg11: memref<8x128xf32, #tpu.memory_space<vmem>>, %arg12: memref<8x128xf32, #tpu.memory_space<vmem>>, %arg13: memref<8x128xf32, #tpu.memory_space<vmem>>) attributes {dimension_semantics = [#tpu.dimension_semantics<parallel>, #tpu.dimension_semantics<arbitrary>], iteration_bounds = array<i64: 1, 1>, scalar_prefetch = 0 : i64, scratch_operands = 1 : i64, tpu.core_type = #tpu.core_type<tc>, window_params = [{transform_indices = @transform_0, window_bounds = array<i64: 8, 8, 128>}, {transform_indices = @transform_1, window_bounds = array<i64: 8, 8, 1>}, {pipeline_mode = #tpu.pipeline_mode<synchronous>, transform_indices = @transform_2, window_bounds = array<i64: 128, 256>}, {pipeline_mode = #tpu.pipeline_mode<synchronous>, transform_indices = @transform_3, window_bounds = array<i64: 1, 256>}, {pipeline_mode = #tpu.pipeline_mode<synchronous>, transform_indices = @transform_4, window_bounds = array<i64: 128, 128>}, {pipeline_mode = #tpu.pipeline_mode<synchronous>, transform_indices = @transform_5, window_bounds = array<i64: 1, 128>}, {transform_indices = @transform_6, window_bounds = array<i64: 8, 128>}, {transform_indices = @transform_7, window_bounds = array<i64: 8, 128>}, {transform_indices = @transform_8, window_bounds = array<i64: 8, 128>}, {transform_indices = @transform_9, window_bounds = array<i64: 8, 128>}, {transform_indices = @transform_10, window_bounds = array<i64: 8, 128>}]} {
    %c0_i32 = arith.constant 0 : i32
    %0 = arith.cmpi eq, %arg1, %c0_i32 : i32
    %1 = arith.extui %0 : i1 to i32
    %c0_i32_0 = arith.constant 0 : i32
    %2 = arith.cmpi ne, %1, %c0_i32_0 : i32
    scf.if %2 {
      %cst_12 = arith.constant 0.000000e+00 : f32
      %14 = vector.broadcast %cst_12 : f32 to vector<8x128xf32>
      %c0_13 = arith.constant 0 : index
      %c0_14 = arith.constant 0 : index
      %15 = vector.load %arg13[%c0_13, %c0_14] : memref<8x128xf32, #tpu.memory_space<vmem>>, vector<8x128xf32>
      tpu.vector_store %arg13[%c0_13, %c0_14], %14 {strides = array<i32>} : memref<8x128xf32, #tpu.memory_space<vmem>>, vector<8x128xf32>,
    } else {
    }
    %c0 = arith.constant 0 : index
    %c0_1 = arith.constant 0 : index
    %c0_2 = arith.constant 0 : index
    %3 = vector.load %arg2[%c0, %c0_1, %c0_2] : memref<8x8x128xf32, #tpu.memory_space<vmem>>, vector<8x8x128xf32>
    %c0_3 = arith.constant 0 : index
    %c0_4 = arith.constant 0 : index
    %c0_5 = arith.constant 0 : index
    %4 = vector.load %arg3[%c0_3, %c0_4, %c0_5] : memref<8x8x1xf32, #tpu.memory_space<vmem>>, vector<8x8x1xf32>
    %c0_6 = arith.constant 0 : index
    %c0_7 = arith.constant 0 : index
    %5 = vector.load %arg13[%c0_6, %c0_7] : memref<8x128xf32, #tpu.memory_space<vmem>>, vector<8x128xf32>
    %6 = vector.broadcast %4 : vector<8x8x1xf32> to vector<8x8x128xf32>
    %7 = arith.mulf %3, %6 : vector<8x8x128xf32>
    %cst = arith.constant dense<0.000000e+00> : vector<8x128xf32>
    %8 = vector.multi_reduction <add>, %7, %cst [0] : vector<8x8x128xf32> to vector<8x128xf32>
    %9 = arith.addf %5, %8 : vector<8x128xf32>
    %c0_8 = arith.constant 0 : index
    %c0_9 = arith.constant 0 : index
    %10 = vector.load %arg13[%c0_8, %c0_9] : memref<8x128xf32, #tpu.memory_space<vmem>>, vector<8x128xf32>
    tpu.vector_store %arg13[%c0_8, %c0_9], %9 {strides = array<i32>} : memref<8x128xf32, #tpu.memory_space<vmem>>, vector<8x128xf32>,
    %c0_i32_10 = arith.constant 0 : i32
    %11 = arith.cmpi eq, %arg1, %c0_i32_10 : i32
    %12 = arith.extui %11 : i1 to i32
    %c0_i32_11 = arith.constant 0 : i32
    %13 = arith.cmpi ne, %12, %c0_i32_11 : i32
    scf.if %13 {
      %c0_12 = arith.constant 0 : index
      %c0_13 = arith.constant 0 : index
      %14 = vector.load %arg13[%c0_12, %c0_13] : memref<8x128xf32, #tpu.memory_space<vmem>>, vector<8x128xf32>
      %c0_14 = arith.constant 0 : index
      %c0_15 = arith.constant 0 : index
      %15 = vector.load %arg4[%c0_14, %c0_15] : memref<128x256xf32, #tpu.memory_space<vmem>>, vector<128x256xf32>
      %cst_16 = arith.constant dense<0.000000e+00> : vector<8x256xf32>
      %16 = tpu.matmul %14, %15, %cst_16 {dimension_numbers = #tpu.dot_dimension_numbers<[1], [0], [0], [1], [0, 0, 1, 1], [], []>} : vector<8x128xf32>, vector<128x256xf32>, vector<8x256xf32> -> vector<8x256xf32>
      %c0_17 = arith.constant 0 : index
      %c0_18 = arith.constant 0 : index
      %17 = vector.load %arg5[%c0_17, %c0_18] : memref<1x256xf32, #tpu.memory_space<vmem>>, vector<1x256xf32>
      %18 = vector.broadcast %17 : vector<1x256xf32> to vector<8x256xf32>
      %19 = arith.addf %16, %18 : vector<8x256xf32>
      %20 = vector.extract_strided_slice %19 {offsets = [0, 0], sizes = [8, 128], strides = [1, 1]} : vector<8x256xf32> to vector<8x128xf32>
      %21 = vector.extract_strided_slice %19 {offsets = [0, 128], sizes = [8, 128], strides = [1, 1]} : vector<8x256xf32> to vector<8x128xf32>
      %c0_19 = arith.constant 0 : index
      %c0_20 = arith.constant 0 : index
      %22 = vector.load %arg8[%c0_19, %c0_20] : memref<8x128xf32, #tpu.memory_space<vmem>>, vector<8x128xf32>
      %cst_21 = arith.constant 5.000000e-01 : f32
      %23 = vector.broadcast %cst_21 : f32 to vector<8x128xf32>
      %24 = arith.mulf %23, %21 : vector<8x128xf32>
      %25 = math.exp %24 : vector<8x128xf32>
      %26 = arith.mulf %22, %25 : vector<8x128xf32>
      %27 = arith.addf %20, %26 : vector<8x128xf32>
      %c0_22 = arith.constant 0 : index
      %c0_23 = arith.constant 0 : index
      %28 = vector.load %arg6[%c0_22, %c0_23] : memref<128x128xf32, #tpu.memory_space<vmem>>, vector<128x128xf32>
      %cst_24 = arith.constant dense<0.000000e+00> : vector<8x128xf32>
      %29 = tpu.matmul %27, %28, %cst_24 {dimension_numbers = #tpu.dot_dimension_numbers<[1], [0], [0], [1], [0, 0, 1, 1], [], []>} : vector<8x128xf32>, vector<128x128xf32>, vector<8x128xf32> -> vector<8x128xf32>
      %c0_25 = arith.constant 0 : index
      %c0_26 = arith.constant 0 : index
      %30 = vector.load %arg7[%c0_25, %c0_26] : memref<1x128xf32, #tpu.memory_space<vmem>>, vector<1x128xf32>
      %31 = vector.broadcast %30 : vector<1x128xf32> to vector<8x128xf32>
      %32 = arith.addf %29, %31 : vector<8x128xf32>
      %c0_27 = arith.constant 0 : index
      %c0_28 = arith.constant 0 : index
      %33 = vector.load %arg10[%c0_27, %c0_28] : memref<8x128xf32, #tpu.memory_space<vmem>>, vector<8x128xf32>
      tpu.vector_store %arg10[%c0_27, %c0_28], %20 {strides = array<i32>} : memref<8x128xf32, #tpu.memory_space<vmem>>, vector<8x128xf32>,
      %c0_29 = arith.constant 0 : index
      %c0_30 = arith.constant 0 : index
      %34 = vector.load %arg11[%c0_29, %c0_30] : memref<8x128xf32, #tpu.memory_space<vmem>>, vector<8x128xf32>
      tpu.vector_store %arg11[%c0_29, %c0_30], %21 {strides = array<i32>} : memref<8x128xf32, #tpu.memory_space<vmem>>, vector<8x128xf32>,
      %c0_31 = arith.constant 0 : index
      %c0_32 = arith.constant 0 : index
      %35 = vector.load %arg12[%c0_31, %c0_32] : memref<8x128xf32, #tpu.memory_space<vmem>>, vector<8x128xf32>
      tpu.vector_store %arg12[%c0_31, %c0_32], %27 {strides = array<i32>} : memref<8x128xf32, #tpu.memory_space<vmem>>, vector<8x128xf32>,
      %c0_33 = arith.constant 0 : index
      %c0_34 = arith.constant 0 : index
      %36 = vector.load %arg9[%c0_33, %c0_34] : memref<8x128xf32, #tpu.memory_space<vmem>>, vector<8x128xf32>
      tpu.vector_store %arg9[%c0_33, %c0_34], %32 {strides = array<i32>} : memref<8x128xf32, #tpu.memory_space<vmem>>, vector<8x128xf32>,
    } else {
    }
    return
  }
  func.func @transform_0(%arg0: i32, %arg1: i32) -> (i32, i32, i32) {
    %c0_i32 = arith.constant 0 : i32
    %c0_i32_0 = arith.constant 0 : i32
    return %arg1, %arg0, %c0_i32 : i32, i32, i32
  }
  func.func @transform_1(%arg0: i32, %arg1: i32) -> (i32, i32, i32) {
    %c0_i32 = arith.constant 0 : i32
    %c0_i32_0 = arith.constant 0 : i32
    return %arg1, %arg0, %c0_i32 : i32, i32, i32
  }
  func.func @transform_2(%arg0: i32, %arg1: i32) -> (i32, i32) {
    %c0_i32 = arith.constant 0 : i32
    %c0_i32_0 = arith.constant 0 : i32
    %c0_i32_1 = arith.constant 0 : i32
    return %c0_i32, %c0_i32_0 : i32, i32
  }
  func.func @transform_3(%arg0: i32, %arg1: i32) -> (i32, i32) {
    %c0_i32 = arith.constant 0 : i32
    %c0_i32_0 = arith.constant 0 : i32
    %c0_i32_1 = arith.constant 0 : i32
    return %c0_i32, %c0_i32_0 : i32, i32
  }
  func.func @transform_4(%arg0: i32, %arg1: i32) -> (i32, i32) {
    %c0_i32 = arith.constant 0 : i32
    %c0_i32_0 = arith.constant 0 : i32
    %c0_i32_1 = arith.constant 0 : i32
    return %c0_i32, %c0_i32_0 : i32, i32
  }
  func.func @transform_5(%arg0: i32, %arg1: i32) -> (i32, i32) {
    %c0_i32 = arith.constant 0 : i32
    %c0_i32_0 = arith.constant 0 : i32
    %c0_i32_1 = arith.constant 0 : i32
    return %c0_i32, %c0_i32_0 : i32, i32
  }
  func.func @transform_6(%arg0: i32, %arg1: i32) -> (i32, i32) {
    %c0_i32 = arith.constant 0 : i32
    %c0_i32_0 = arith.constant 0 : i32
    return %arg0, %c0_i32 : i32, i32
  }
  func.func @transform_7(%arg0: i32, %arg1: i32) -> (i32, i32) {
    %c0_i32 = arith.constant 0 : i32
    %c0_i32_0 = arith.constant 0 : i32
    return %arg0, %c0_i32 : i32, i32
  }
  func.func @transform_8(%arg0: i32, %arg1: i32) -> (i32, i32) {
    %c0_i32 = arith.constant 0 : i32
    %c0_i32_0 = arith.constant 0 : i32
    return %arg0, %c0_i32 : i32, i32
  }
  func.func @transform_9(%arg0: i32, %arg1: i32) -> (i32, i32) {
    %c0_i32 = arith.constant 0 : i32
    %c0_i32_0 = arith.constant 0 : i32
    return %arg0, %c0_i32 : i32, i32
  }
  func.func @transform_10(%arg0: i32, %arg1: i32) -> (i32, i32) {
    %c0_i32 = arith.constant 0 : i32
    %c0_i32_0 = arith.constant 0 : i32
    return %arg0, %c0_i32 : i32, i32
  }
}

</mosaic_0001>

<llo_original>
// kernel: tpu_custom_call.1
$region0: #{tpu_custom_call.1}
  #allocation0 [shape = 'u32[]', space=smem, size = 0x4, offset = 0x4, fixed_abs, tag = 'smem constant byte address 0x4 - core index']
  #allocation1 [shape = 'u32[144,128]{1,0:T(1,128)}', space=vmem, size = 0x12000, scoped, tag = 'internal scratch']
  #allocation2 [shape = 'f32[8,128]{1,0:T(8,128)}', space=vmem, size = 0x1000, scoped, tag = 'scratch operand']
  %s0 = inlined_call_operand.vmem [shape: f32[8,8,128], index: 0, kind: input, shape index: {}]
  %s1 = inlined_call_operand.vmem [shape: f32[8,8,1], index: 1, kind: input, shape index: {}]
  %s2 = inlined_call_operand.hbm [shape: f32[128,256], index: 2, kind: input, shape index: {}]
  %s3 = inlined_call_operand.vmem [shape: f32[1,256], index: 3, kind: input, shape index: {}]
  %s4 = inlined_call_operand.hbm [shape: f32[128,128], index: 4, kind: input, shape index: {}]
  %s5 = inlined_call_operand.vmem [shape: f32[1,128], index: 5, kind: input, shape index: {}]
  %s6 = inlined_call_operand.vmem [shape: f32[8,128], index: 6, kind: input, shape index: {}]
  %s7 = inlined_call_operand.hbm [shape: f32[8,128], index: 7, kind: output, shape index: {0}]
  %s8 = inlined_call_operand.hbm [shape: f32[8,128], index: 8, kind: output, shape index: {1}]
  %s9 = inlined_call_operand.hbm [shape: f32[8,128], index: 9, kind: output, shape index: {2}]
  %s10 = inlined_call_operand.hbm [shape: f32[8,128], index: 10, kind: output, shape index: {3}]
  %11 = xla_tuple %s7, %s8, %s9, %s10
  %s12 = sld [smem:[#allocation0]]
  $region78: #{tpu_custom_call.1} parent=0
    _
  %s14 = ssub.s32 1, %s12
  %s15 = scalar_select 0, %s14, %s12
  $region1: #{tpu_custom_call.1} parent=0
    #allocation3 [shape = 'u8[131072]{0}', space=vmem, size = 0x20000, scoped, tag = 'input window, operand 2, single buffered']
    #allocation4 [shape = 's32[1]{0}', space=sflag, size = 0x4, scoped, tag = 'scoped memory for tpu_custom_call.1']
    #allocation5 [shape = 's32[1]{0}', space=sflag, size = 0x4, scoped, tag = 'scoped memory for tpu_custom_call.1']
    #allocation6 [shape = 'u8[65536]{0}', space=vmem, size = 0x10000, scoped, tag = 'input window, operand 4, single buffered']
    #allocation7 [shape = 's32[1]{0}', space=sflag, size = 0x4, scoped, tag = 'scoped memory for tpu_custom_call.1']
    #allocation8 [shape = 'u8[4096]{0}', space=vmem, size = 0x1000, scoped, tag = 'output window, operand 0, single buffered']
    #allocation9 [shape = 'u8[4096]{0}', space=vmem, size = 0x1000, scoped, tag = 'output window, operand 1, single buffered']
    #allocation10 [shape = 's32[1]{0}', space=sflag, size = 0x4, scoped, tag = 'scoped memory for tpu_custom_call.1']
    #allocation11 [shape = 'u8[4096]{0}', space=vmem, size = 0x1000, scoped, tag = 'output window, operand 2, single buffered']
    #allocation12 [shape = 'u8[4096]{0}', space=vmem, size = 0x1000, scoped, tag = 'output window, operand 3, single buffered']
    #allocation13 [shape = 's32[1]{0}', space=sflag, size = 0x4, scoped, tag = 'scoped memory for tpu_custom_call.1']
    %16 = vsyncpa [#allocation4], 0
    %17 = vsyncpa [#allocation7], 0
    %18 = vsyncpa [#allocation5], 0
    %19 = vsyncpa [#allocation10], 0
    %20 = vsyncpa [#allocation13], 0
    // Predicated region
    $region2: #{tpu_custom_call.1} parent=1 // pred_check
      _
    $region3: #{tpu_custom_call.1} parent=1 // pred_check_branch
      %22 = sbr.rel (0) target = $region5
    $region4: #{tpu_custom_call.1} parent=1 // pred_region
      _
    $region5: #{tpu_custom_call.1} parent=1 // pred_fallthru
      _
    // Predicated region
    $region6: #{tpu_custom_call.1} parent=1 // pred_check
      _
    $region7: #{tpu_custom_call.1} parent=1 // pred_check_branch
      %24 = sbr.rel (0) target = $region9
    $region8: #{tpu_custom_call.1} parent=1 // pred_region
      _
    $region9: #{tpu_custom_call.1} parent=1 // pred_fallthru
      _
    // Predicated region
    $region10: #{tpu_custom_call.1} parent=1 // pred_check
      _
    $region11: #{tpu_custom_call.1} parent=1 // pred_check_branch
      %26 = sbr.rel (0) target = $region13
    $region12: #{tpu_custom_call.1} parent=1 // pred_region
      %s28 = ssub.s32 4096, 4096
      %29 = vsyncadd [#allocation4], %s28
      %s30 = sshll.u32 [#allocation3], 4
      %s31 = int_to_ptr.vmem [resolvable:$true] %s30
      %36 = dma.hbm_to_vmem [thread:$0]  %s2, 4096, %s31, [#allocation4], 256, 256, 16
    $region13: #{tpu_custom_call.1} parent=1 // pred_fallthru
      _
    // Predicated region
    $region14: #{tpu_custom_call.1} parent=1 // pred_check
      _
    $region15: #{tpu_custom_call.1} parent=1 // pred_check_branch
      %38 = sbr.rel (0) target = $region17
    $region16: #{tpu_custom_call.1} parent=1 // pred_region
      _
    $region17: #{tpu_custom_call.1} parent=1 // pred_fallthru
      _
    // Predicated region
    $region18: #{tpu_custom_call.1} parent=1 // pred_check
      _
    $region19: #{tpu_custom_call.1} parent=1 // pred_check_branch
      %40 = sbr.rel (0) target = $region21
    $region20: #{tpu_custom_call.1} parent=1 // pred_region
      %s42 = ssub.s32 2048, 2048
      %43 = vsyncadd [#allocation7], %s42
      %s44 = sshll.u32 [#allocation6], 4
      %s45 = int_to_ptr.vmem [resolvable:$true] %s44
      %50 = dma.hbm_to_vmem [thread:$0]  %s4, 2048, %s45, [#allocation7], 128, 128, 8
    $region21: #{tpu_custom_call.1} parent=1 // pred_fallthru
      _
    // Predicated region
    $region22: #{tpu_custom_call.1} parent=1 // pred_check
      _
    $region23: #{tpu_custom_call.1} parent=1 // pred_check_branch
      %52 = sbr.rel (0) target = $region25
    $region24: #{tpu_custom_call.1} parent=1 // pred_region
      _
    $region25: #{tpu_custom_call.1} parent=1 // pred_fallthru
      _
    // Predicated region
    $region26: #{tpu_custom_call.1} parent=1 // pred_check
      _
    $region27: #{tpu_custom_call.1} parent=1 // pred_check_branch
      %54 = sbr.rel (0) target = $region29
    $region28: #{tpu_custom_call.1} parent=1 // pred_region
      _
    $region29: #{tpu_custom_call.1} parent=1 // pred_fallthru
      _
    // Predicated region
    $region30: #{tpu_custom_call.1} parent=1 // pred_check
      _
    $region31: #{tpu_custom_call.1} parent=1 // pred_check_branch
      %56 = sbr.rel (0) target = $region33
    $region32: #{tpu_custom_call.1} parent=1 // pred_region
      %57 = dma.done [#allocation4], 4096
    $region33: #{tpu_custom_call.1} parent=1 // pred_fallthru
      _
    // Predicated region
    $region34: #{tpu_custom_call.1} parent=1 // pred_check
      _
    $region35: #{tpu_custom_call.1} parent=1 // pred_check_branch
      %59 = sbr.rel (0) target = $region37
    $region36: #{tpu_custom_call.1} parent=1 // pred_region
      %60 = dma.done [#allocation7], 2048
    $region37: #{tpu_custom_call.1} parent=1 // pred_fallthru
      _
    %p61 = scmp.eq.s32.totalorder 0, 0
    // Predicated region
    $region38: #{tpu_custom_call.1} parent=1 // pred_check
      %p62 = pneg %p61
    $region39: #{tpu_custom_call.1} parent=1 // pred_check_branch
      %64 = sbr.rel (%p62) target = $region41
    $region40: #{tpu_custom_call.1} parent=1 // pred_region
      %65 = vst [vmem:[#allocation2] sm:$0xff] 0.0
    $region41: #{tpu_custom_call.1} parent=1 // pred_fallthru
      _
    %v66 = vld [vmem:[%s0] sm:$0xff]
    %v67 = vld [vmem:[%s0 + $0x8] sm:$0xff]
    %v68 = vld [vmem:[%s0 + $0x10] sm:$0xff]
    %v69 = vld [vmem:[%s0 + $0x18] sm:$0xff]
    %v70 = vld [vmem:[%s0 + $0x20] sm:$0xff]
    %v71 = vld [vmem:[%s0 + $0x28] sm:$0xff]
    %v72 = vld [vmem:[%s0 + $0x30] sm:$0xff]
    %v73 = vld [vmem:[%s0 + $0x38] sm:$0xff]
    %v74 = vld [vmem:[%s1] sm:$0xff]
    %v75 = vld [vmem:[%s1 + $0x8] sm:$0xff]
    %v76 = vld [vmem:[%s1 + $0x10] sm:$0xff]
    %v77 = vld [vmem:[%s1 + $0x18] sm:$0xff]
    %v78 = vld [vmem:[%s1 + $0x20] sm:$0xff]
    %v79 = vld [vmem:[%s1 + $0x28] sm:$0xff]
    %v80 = vld [vmem:[%s1 + $0x30] sm:$0xff]
    %v81 = vld [vmem:[%s1 + $0x38] sm:$0xff]
    %v82 = vld [vmem:[#allocation2] sm:$0xff]
    %84 = vset.pattern.permute.xlu0 0
    %85 = vperm.xlu0 %84, %v74
    %v86 = vpop.permute.xlu0 %85
    %89 = vset.pattern.permute.xlu0 0
    %90 = vperm.xlu0 %89, %v75
    %v91 = vpop.permute.xlu0 %90
    %94 = vset.pattern.permute.xlu0 0
    %95 = vperm.xlu0 %94, %v76
    %v96 = vpop.permute.xlu0 %95
    %99 = vset.pattern.permute.xlu0 0
    %100 = vperm.xlu0 %99, %v77
    %v101 = vpop.permute.xlu0 %100
    %104 = vset.pattern.permute.xlu0 0
    %105 = vperm.xlu0 %104, %v78
    %v106 = vpop.permute.xlu0 %105
    %109 = vset.pattern.permute.xlu0 0
    %110 = vperm.xlu0 %109, %v79
    %v111 = vpop.permute.xlu0 %110
    %114 = vset.pattern.permute.xlu0 0
    %115 = vperm.xlu0 %114, %v80
    %v116 = vpop.permute.xlu0 %115
    %119 = vset.pattern.permute.xlu0 0
    %120 = vperm.xlu0 %119, %v81
    %v121 = vpop.permute.xlu0 %120
    %v123 = vmul.f32 %v66, %v86
    %v124 = vmul.f32 %v67, %v91
    %v125 = vmul.f32 %v68, %v96
    %v126 = vmul.f32 %v69, %v101
    %v127 = vmul.f32 %v70, %v106
    %v128 = vmul.f32 %v71, %v111
    %v129 = vmul.f32 %v72, %v116
    %v130 = vmul.f32 %v73, %v121
    %v131 = vadd.f32 %v123, %v124
    %v132 = vadd.f32 %v131, %v125
    %v133 = vadd.f32 %v132, %v126
    %v134 = vadd.f32 %v133, %v127
    %v135 = vadd.f32 %v134, %v128
    %v136 = vadd.f32 %v135, %v129
    %v137 = vadd.f32 %v136, %v130
    %v138 = vadd.f32 %v82, %v137
    %139 = vst [vmem:[#allocation2] sm:$0xff] %v138
    // Predicated region
    $region42: #{tpu_custom_call.1} parent=1 // pred_check
      %p140 = pneg %p61
    $region43: #{tpu_custom_call.1} parent=1 // pred_check_branch
      %142 = sbr.rel (%p140) target = $region45
    $region44: #{tpu_custom_call.1} parent=1 // pred_region
      %v143 = vld [vmem:[#allocation2] sm:$0xff]
      %v144 = vld [vmem:[#allocation3] sm:$0xff]
      %v145 = vld [vmem:[#allocation3 + $0x8] sm:$0xff]
      %v146 = vld [vmem:[#allocation3 + $0x10] sm:$0xff]
      %v147 = vld [vmem:[#allocation3 + $0x18] sm:$0xff]
      %v148 = vld [vmem:[#allocation3 + $0x20] sm:$0xff]
      %v149 = vld [vmem:[#allocation3 + $0x28] sm:$0xff]
      %v150 = vld [vmem:[#allocation3 + $0x30] sm:$0xff]
      %v151 = vld [vmem:[#allocation3 + $0x38] sm:$0xff]
      %v152 = vld [vmem:[#allocation3 + $0x40] sm:$0xff]
      %v153 = vld [vmem:[#allocation3 + $0x48] sm:$0xff]
      %v154 = vld [vmem:[#allocation3 + $0x50] sm:$0xff]
      %v155 = vld [vmem:[#allocation3 + $0x58] sm:$0xff]
      %v156 = vld [vmem:[#allocation3 + $0x60] sm:$0xff]
      %v157 = vld [vmem:[#allocation3 + $0x68] sm:$0xff]
      %v158 = vld [vmem:[#allocation3 + $0x70] sm:$0xff]
      %v159 = vld [vmem:[#allocation3 + $0x78] sm:$0xff]
      %v160 = vld [vmem:[#allocation3 + $0x80] sm:$0xff]
      %v161 = vld [vmem:[#allocation3 + $0x88] sm:$0xff]
      %v162 = vld [vmem:[#allocation3 + $0x90] sm:$0xff]
      %v163 = vld [vmem:[#allocation3 + $0x98] sm:$0xff]
      %v164 = vld [vmem:[#allocation3 + $0xa0] sm:$0xff]
      %v165 = vld [vmem:[#allocation3 + $0xa8] sm:$0xff]
      %v166 = vld [vmem:[#allocation3 + $0xb0] sm:$0xff]
      %v167 = vld [vmem:[#allocation3 + $0xb8] sm:$0xff]
      %v168 = vld [vmem:[#allocation3 + $0xc0] sm:$0xff]
      %v169 = vld [vmem:[#allocation3 + $0xc8] sm:$0xff]
      %v170 = vld [vmem:[#allocation3 + $0xd0] sm:$0xff]
      %v171 = vld [vmem:[#allocation3 + $0xd8] sm:$0xff]
      %v172 = vld [vmem:[#allocation3 + $0xe0] sm:$0xff]
      %v173 = vld [vmem:[#allocation3 + $0xe8] sm:$0xff]
      %v174 = vld [vmem:[#allocation3 + $0xf0] sm:$0xff]
      %v175 = vld [vmem:[#allocation3 + $0xf8] sm:$0xff]
      %v176 = vld [vmem:[%s3] sm:$0x3]
      %v178 = vlaneseq
      %v179 = vshrl.u32 %v178, 7
      %v180 = vsub.s32 0, %v179
      %v181 = vrot.slane %v176, %v180
      %v182 = vlaneseq
      %v183 = vshrl.u32 %v182, 7
      %v184 = vsub.s32 1, %v183
      %v185 = vrot.slane %v176, %v184
      %188 = vmatprep.subr.mxu0 %v175
      %189 = vmatpush1.msra.mxu0 %v174
      %190 = vmatprep.subr.mxu0 %v173
      %191 = vmatpush1.msra.mxu0 %v172
      %192 = vmatprep.subr.mxu0 %v171
      %193 = vmatpush1.msra.mxu0 %v170
      %194 = vmatprep.subr.mxu0 %v169
      %195 = vmatpush1.msra.mxu0 %v168
      %196 = vmatprep.subr.mxu0 %v167
      %197 = vmatpush1.msra.mxu0 %v166
      %198 = vmatprep.subr.mxu0 %v165
      %199 = vmatpush1.msra.mxu0 %v164
      %200 = vmatprep.subr.mxu0 %v163
      %201 = vmatpush1.msra.mxu0 %v162
      %202 = vmatprep.subr.mxu0 %v161
      %203 = vmatpush1.msra.mxu0 %v160
      %204 = vmatprep.subr.mxu0 %v159
      %205 = vmatpush1.msra.mxu0 %v158
      %206 = vmatprep.subr.mxu0 %v157
      %207 = vmatpush1.msra.mxu0 %v156
      %208 = vmatprep.subr.mxu0 %v155
      %209 = vmatpush1.msra.mxu0 %v154
      %210 = vmatprep.subr.mxu0 %v153
      %211 = vmatpush1.msra.mxu0 %v152
      %212 = vmatprep.subr.mxu0 %v151
      %213 = vmatpush1.msra.mxu0 %v150
      %214 = vmatprep.subr.mxu0 %v149
      %215 = vmatpush1.msra.mxu0 %v148
      %216 = vmatprep.subr.mxu0 %v147
      %217 = vmatpush1.msra.mxu0 %v146
      %218 = vmatprep.subr.mxu0 %v145
      %219 = vmatpush1.msra.mxu0 %v144
      %220 = vmatprep.subr.mxu0 0.0
      %221 = vmatpush2.msra.mxu0 0.0
      %222 = vmatprep.subr.mxu0 0.0
      %223 = vmatpush2.msra.mxu0 0.0
      %224 = vmatprep.subr.mxu0 0.0
      %225 = vmatpush2.msra.mxu0 0.0
      %226 = vmatprep.subr.mxu0 0.0
      %227 = vmatpush2.msra.mxu0 0.0
      %228 = vmatprep.subr.mxu0 0.0
      %229 = vmatpush2.msra.mxu0 0.0
      %230 = vmatprep.subr.mxu0 0.0
      %231 = vmatpush2.msra.mxu0 0.0
      %232 = vmatprep.subr.mxu0 0.0
      %233 = vmatpush2.msra.mxu0 0.0
      %234 = vmatprep.subr.mxu0 0.0
      %235 = vmatpush2.msra.mxu0 0.0
      %236 = vmatprep.subr.mxu0 0.0
      %237 = vmatpush2.msra.mxu0 0.0
      %238 = vmatprep.subr.mxu0 0.0
      %239 = vmatpush2.msra.mxu0 0.0
      %240 = vmatprep.subr.mxu0 0.0
      %241 = vmatpush2.msra.mxu0 0.0
      %242 = vmatprep.subr.mxu0 0.0
      %243 = vmatpush2.msra.mxu0 0.0
      %244 = vmatprep.subr.mxu0 0.0
      %245 = vmatpush2.msra.mxu0 0.0
      %246 = vmatprep.subr.mxu0 0.0
      %247 = vmatpush2.msra.mxu0 0.0
      %248 = vmatprep.subr.mxu0 0.0
      %249 = vmatpush2.msra.mxu0 0.0
      %250 = vmatprep.subr.mxu0 0.0
      %251 = vmatpush2.msra.mxu0 0.0
      %252 = vmatprep.mubr.f32.mxu0 0.0
      %253 = vmatmul.mubr.f32.gmra.mxu0 %v143
      %v254 = vpop.f32.mrf.mxu0
      %v255 = vadd.f32 %v181, %v254
      %v256 = vpop.f32.mrf.mxu0
      %v257 = vadd.f32 %v185, %v256
      %258 = vdwg.mxu0
      %v259 = vld [vmem:[%s6] sm:$0xff]
      %v260 = vmul.f32 %v257, 0.5
      %v261 = vmul.f32 %v260, 1.442695
      %v262 = vpow.pop %v261
      %v263 = vmul.f32 %v259, %v262
      %v264 = vadd.f32 %v255, %v263
      %v265 = vld [vmem:[#allocation6] sm:$0xff]
      %v266 = vld [vmem:[#allocation6 + $0x8] sm:$0xff]
      %v267 = vld [vmem:[#allocation6 + $0x10] sm:$0xff]
      %v268 = vld [vmem:[#allocation6 + $0x18] sm:$0xff]
      %v269 = vld [vmem:[#allocation6 + $0x20] sm:$0xff]
      %v270 = vld [vmem:[#allocation6 + $0x28] sm:$0xff]
      %v271 = vld [vmem:[#allocation6 + $0x30] sm:$0xff]
      %v272 = vld [vmem:[#allocation6 + $0x38] sm:$0xff]
      %v273 = vld [vmem:[#allocation6 + $0x40] sm:$0xff]
      %v274 = vld [vmem:[#allocation6 + $0x48] sm:$0xff]
      %v275 = vld [vmem:[#allocation6 + $0x50] sm:$0xff]
      %v276 = vld [vmem:[#allocation6 + $0x58] sm:$0xff]
      %v277 = vld [vmem:[#allocation6 + $0x60] sm:$0xff]
      %v278 = vld [vmem:[#allocation6 + $0x68] sm:$0xff]
      %v279 = vld [vmem:[#allocation6 + $0x70] sm:$0xff]
      %v280 = vld [vmem:[#allocation6 + $0x78] sm:$0xff]
      %v281 = vld [vmem:[%s5] sm:$0x1]
      %v283 = vlaneseq
      %v284 = vshrl.u32 %v283, 7
      %v285 = vsub.s32 0, %v284
      %v286 = vrot.slane %v281, %v285
      %288 = vmatprep.subr.mxu0 0.0
      %289 = vmatpush1.msra.mxu0 %v280
      %290 = vmatprep.subr.mxu0 0.0
      %291 = vmatpush1.msra.mxu0 %v279
      %292 = vmatprep.subr.mxu0 0.0
      %293 = vmatpush1.msra.mxu0 %v278
      %294 = vmatprep.subr.mxu0 0.0
      %295 = vmatpush1.msra.mxu0 %v277
      %296 = vmatprep.subr.mxu0 0.0
      %297 = vmatpush1.msra.mxu0 %v276
      %298 = vmatprep.subr.mxu0 0.0
      %299 = vmatpush1.msra.mxu0 %v275
      %300 = vmatprep.subr.mxu0 0.0
      %301 = vmatpush1.msra.mxu0 %v274
      %302 = vmatprep.subr.mxu0 0.0
      %303 = vmatpush1.msra.mxu0 %v273
      %304 = vmatprep.subr.mxu0 0.0
      %305 = vmatpush1.msra.mxu0 %v272
      %306 = vmatprep.subr.mxu0 0.0
      %307 = vmatpush1.msra.mxu0 %v271
      %308 = vmatprep.subr.mxu0 0.0
      %309 = vmatpush1.msra.mxu0 %v270
      %310 = vmatprep.subr.mxu0 0.0
      %311 = vmatpush1.msra.mxu0 %v269
      %312 = vmatprep.subr.mxu0 0.0
      %313 = vmatpush1.msra.mxu0 %v268
      %314 = vmatprep.subr.mxu0 0.0
      %315 = vmatpush1.msra.mxu0 %v267
      %316 = vmatprep.subr.mxu0 0.0
      %317 = vmatpush1.msra.mxu0 %v266
      %318 = vmatprep.subr.mxu0 0.0
      %319 = vmatpush1.msra.mxu0 %v265
      %320 = vmatprep.subr.mxu0 0.0
      %321 = vmatpush2.msra.mxu0 0.0
      %322 = vmatprep.subr.mxu0 0.0
      %323 = vmatpush2.msra.mxu0 0.0
      %324 = vmatprep.subr.mxu0 0.0
      %325 = vmatpush2.msra.mxu0 0.0
      %326 = vmatprep.subr.mxu0 0.0
      %327 = vmatpush2.msra.mxu0 0.0
      %328 = vmatprep.subr.mxu0 0.0
      %329 = vmatpush2.msra.mxu0 0.0
      %330 = vmatprep.subr.mxu0 0.0
      %331 = vmatpush2.msra.mxu0 0.0
      %332 = vmatprep.subr.mxu0 0.0
      %333 = vmatpush2.msra.mxu0 0.0
      %334 = vmatprep.subr.mxu0 0.0
      %335 = vmatpush2.msra.mxu0 0.0
      %336 = vmatprep.subr.mxu0 0.0
      %337 = vmatpush2.msra.mxu0 0.0
      %338 = vmatprep.subr.mxu0 0.0
      %339 = vmatpush2.msra.mxu0 0.0
      %340 = vmatprep.subr.mxu0 0.0
      %341 = vmatpush2.msra.mxu0 0.0
      %342 = vmatprep.subr.mxu0 0.0
      %343 = vmatpush2.msra.mxu0 0.0
      %344 = vmatprep.subr.mxu0 0.0
      %345 = vmatpush2.msra.mxu0 0.0
      %346 = vmatprep.subr.mxu0 0.0
      %347 = vmatpush2.msra.mxu0 0.0
      %348 = vmatprep.subr.mxu0 0.0
      %349 = vmatpush2.msra.mxu0 0.0
      %350 = vmatprep.subr.mxu0 0.0
      %351 = vmatpush2.msra.mxu0 0.0
      %352 = vmatprep.mubr.f32.mxu0 0.0
      %353 = vmatmul.mubr.f32.gmra.mxu0 %v264
      %v354 = vpop.f32.mrf.mxu0
      %v355 = vadd.f32 %v286, %v354
      %v356 = vpop.f32.mrf.mxu0
      %357 = vdwg.mxu0
      %358 = vst [vmem:[#allocation9] sm:$0xff] %v255
      %359 = vst [vmem:[#allocation11] sm:$0xff] %v257
      %360 = vst [vmem:[#allocation12] sm:$0xff] %v264
      %361 = vst [vmem:[#allocation8] sm:$0xff] %v355
    $region45: #{tpu_custom_call.1} parent=1 // pred_fallthru
      _
    // Predicated region
    $region46: #{tpu_custom_call.1} parent=1 // pred_check
      _
    $region47: #{tpu_custom_call.1} parent=1 // pred_check_branch
      %363 = sbr.rel (0) target = $region49
    $region48: #{tpu_custom_call.1} parent=1 // pred_region
      %s365 = ssub.s32 128, 128
      %366 = vsyncadd [#allocation5], %s365
      %s368 = sshll.u32 [#allocation8], 4
      %s369 = int_to_ptr.vmem [resolvable:$true] %s368
      %371 = dma.vmem_to_hbm [thread:$0]  %s369, 128, %s7, [#allocation5]
    $region49: #{tpu_custom_call.1} parent=1 // pred_fallthru
      _
    // Predicated region
    $region50: #{tpu_custom_call.1} parent=1 // pred_check
      _
    $region51: #{tpu_custom_call.1} parent=1 // pred_check_branch
      %373 = sbr.rel (0) target = $region53
    $region52: #{tpu_custom_call.1} parent=1 // pred_region
      %s375 = ssub.s32 128, 128
      %376 = vsyncadd [#allocation10], %s375
      %s378 = sshll.u32 [#allocation9], 4
      %s379 = int_to_ptr.vmem [resolvable:$true] %s378
      %381 = dma.vmem_to_hbm [thread:$0]  %s379, 128, %s8, [#allocation10]
    $region53: #{tpu_custom_call.1} parent=1 // pred_fallthru
      _
    // Predicated region
    $region54: #{tpu_custom_call.1} parent=1 // pred_check
      _
    $region55: #{tpu_custom_call.1} parent=1 // pred_check_branch
      %383 = sbr.rel (0) target = $region57
    $region56: #{tpu_custom_call.1} parent=1 // pred_region
      %s385 = ssub.s32 128, 128
      %386 = vsyncadd [#allocation10], %s385
      %s388 = sshll.u32 [#allocation11], 4
      %s389 = int_to_ptr.vmem [resolvable:$true] %s388
      %391 = dma.vmem_to_hbm [thread:$0]  %s389, 128, %s9, [#allocation10]
    $region57: #{tpu_custom_call.1} parent=1 // pred_fallthru
      _
    // Predicated region
    $region58: #{tpu_custom_call.1} parent=1 // pred_check
      _
    $region59: #{tpu_custom_call.1} parent=1 // pred_check_branch
      %393 = sbr.rel (0) target = $region61
    $region60: #{tpu_custom_call.1} parent=1 // pred_region
      %s395 = ssub.s32 128, 128
      %396 = vsyncadd [#allocation13], %s395
      %s398 = sshll.u32 [#allocation12], 4
      %s399 = int_to_ptr.vmem [resolvable:$true] %s398
      %401 = dma.vmem_to_hbm [thread:$0]  %s399, 128, %s10, [#allocation13]
    $region61: #{tpu_custom_call.1} parent=1 // pred_fallthru
      _
    // Predicated region
    $region62: #{tpu_custom_call.1} parent=1 // pred_check
      _
    $region63: #{tpu_custom_call.1} parent=1 // pred_check_branch
      %403 = sbr.rel (0) target = $region65
    $region64: #{tpu_custom_call.1} parent=1 // pred_region
      %404 = dma.done [#allocation5], 128
    $region65: #{tpu_custom_call.1} parent=1 // pred_fallthru
      _
    // Predicated region
    $region66: #{tpu_custom_call.1} parent=1 // pred_check
      _
    $region67: #{tpu_custom_call.1} parent=1 // pred_check_branch
      %406 = sbr.rel (0) target = $region69
    $region68: #{tpu_custom_call.1} parent=1 // pred_region
      %407 = dma.done [#allocation10], 128
    $region69: #{tpu_custom_call.1} parent=1 // pred_fallthru
      _
    // Predicated region
    $region70: #{tpu_custom_call.1} parent=1 // pred_check
      _
    $region71: #{tpu_custom_call.1} parent=1 // pred_check_branch
      %409 = sbr.rel (0) target = $region73
    $region72: #{tpu_custom_call.1} parent=1 // pred_region
      %410 = dma.done [#allocation10], 128
    $region73: #{tpu_custom_call.1} parent=1 // pred_fallthru
      _
    // Predicated region
    $region74: #{tpu_custom_call.1} parent=1 // pred_check
      _
    $region75: #{tpu_custom_call.1} parent=1 // pred_check_branch
      %412 = sbr.rel (0) target = $region77
    $region76: #{tpu_custom_call.1} parent=1 // pred_region
      %413 = dma.done [#allocation13], 128
    $region77: #{tpu_custom_call.1} parent=1 // pred_fallthru
      _
    %414 = vsyncpa [#allocation4], 1
    %415 = vsyncpa [#allocation7], 1
    %416 = vsyncpa [#allocation5], 1
    %417 = vsyncpa [#allocation10], 1
    %418 = vsyncpa [#allocation13], 1

</llo_original>
